<compile_context>
chip_gen: v7x
topology: tpu7x:2x2x1
jax: 0.10.0
libtpu: 0.0.40
codegen_flags: <defaults>
</compile_context>

<pallas_src>
import functools

import jax
import jax.numpy as jnp
import numpy as np
from jax import lax
from jax.experimental import pallas as pl
from jax.experimental.pallas import tpu as pltpu

EPS = 1e-5
_MIN_TILES = 8                      # aim for >= this many grid steps (>= 2 per v7x core)
_DEFAULT_VMEM = 64 * 1024 * 1024    # conservative fallback (v7x capacity)


def _vmem_capacity_bytes():
    try:
        return int(pltpu.get_tpu_info().vmem_capacity_bytes)
    except Exception:
        return _DEFAULT_VMEM


# ---------------------------------------------------------------------------
# Pass 1: per-channel sum and Cin x Cin Gram matrix of (x - shift).
# Grid = (n_split "parallel", steps "arbitrary"); each split owns its own
# (Cin,1)/(Cin,Cin) accumulator slab; the wrapper reduces over splits and folds
# BatchNorm into the conv weight/bias (linearity of the 1x1 conv).
# ---------------------------------------------------------------------------
def _make_stats_kernel(nb, n_total, steps_per_split):
    def kernel(x_ref, shift_ref, s1_ref, g_ref):
        @pl.when(pl.program_id(1) == 0)
        def _init():
            s1_ref[...] = jnp.zeros_like(s1_ref)
            g_ref[...] = jnp.zeros_like(g_ref)

        base = (pl.program_id(0) * steps_per_split + pl.program_id(1)) * nb
        shift = shift_ref[...]                                   # (Cin, 1), f32

        def body(n, carry):
            valid = base + n < n_total                           # ragged / overhang guard
            xn = x_ref[n].astype(jnp.float32) - shift            # (Cin, HW), f32
            xn = jnp.where(valid, xn, 0.0)
            s1_ref[...] += jnp.sum(xn, axis=1, keepdims=True)[None]          # (1, Cin, 1)
            g_ref[...] += lax.dot_general(                                   # (1, Cin, Cin)
                xn, xn, (((1,), (1,)), ((), ())),
                preferred_element_type=jnp.float32)[None]
            return carry

        lax.fori_loop(0, nb, body, 0)

    return kernel


# ---------------------------------------------------------------------------
# Pass 2: fused 1x1 conv (BN and, for avg, the 1/9 folded into weight/bias)
# + ReLU + separable 3x3 / stride-1 / pad-1 pool, one image per inner step.
# Each image is a lane-dense (Cout, H*W) slab; shifts are lane rolls.
# ---------------------------------------------------------------------------
def _make_main_kernel(nb, height, width, avg_or_max):
    hw = height * width
    is_avg = avg_or_max == "avg"

    def kernel(x_ref, w_ref, b_ref, m_ref, o_ref):
        # Grid-invariant operands hoisted out of the image loop.
        w = w_ref[...]                                           # (Cout, Cin), I/O dtype
        b = b_ref[...]                                           # (Cout, 1), f32
        m = m_ref[...]                                           # (4, HW), f32 masks
        m_lo, m_hi = m[0:1, :], m[1:2, :]
        m_top, m_bot = m[2:3, :], m[3:4, :]

        def body(n, carry):
            xn = x_ref[n]                                        # (Cin, HW)
            # 1x1 conv on the MXU (f32 accumulate), BN already folded, then ReLU.
            y = jnp.dot(w, xn, preferred_element_type=jnp.float32)   # (Cout, HW)
            y = jnp.maximum(y + b, 0.0)

            # 1x3 (W) pass: lane roll by +/-1; wrapped neighbors killed by masks.
            # 0 is a valid neutral for both avg (count_include_pad) and max (y >= 0).
            left = pltpu.roll(y, shift=1, axis=1) * m_lo
            right = pltpu.roll(y, shift=hw - 1, axis=1) * m_hi
            if is_avg:
                pw = y + left + right
            else:
                pw = jnp.maximum(y, jnp.maximum(left, right))

            # 3x1 (H) pass: lane roll by +/-W (the whole image lives in the lane axis).
            up = pltpu.roll(pw, shift=width, axis=1) * m_top
            down = pltpu.roll(pw, shift=hw - width, axis=1) * m_bot
            if is_avg:
                out = pw + up + down                             # 1/9 folded into w/b
            else:
                out = jnp.maximum(pw, jnp.maximum(up, down))

            o_ref[n] = out.astype(o_ref.dtype)
            return carry

        lax.fori_loop(0, nb, body, 0)

    return kernel


@functools.partial(jax.jit, static_argnames=("avg_or_max",))
def pool_branch(x_nchw, weight, gamma, beta, avg_or_max):
    """x_nchw: (N, Cin, H, W); weight: (Cout, Cin, 1, 1); gamma/beta: (Cout,)."""
    if avg_or_max not in ("avg", "max"):
        raise ValueError("Unknown pool {}".format(avg_or_max))

    N, Cin, H, W = x_nchw.shape
    Cout = weight.shape[0]
    HW = H * W
    io_dtype = x_nchw.dtype
    isz = np.dtype(io_dtype).itemsize

    # NCHW-native view: merging trailing dims is free (no HBM transpose round trip).
    x3 = x_nchw.reshape(N, Cin, HW)

    # ----- tile sizing from queried VMEM (v5e/v6e: 128 MiB, v7x: 64 MiB) ------------
    vmem_cap = _vmem_capacity_bytes()
    per_image = 2 * HW * (Cin + Cout) * isz + 4096       # double-buffered in + out tiles
    nb_vmem = max(1, (vmem_cap // 2) // per_image)
    nb_tiles = max(1, pl.cdiv(N, _MIN_TILES))            # keep the grid >= _MIN_TILES steps
    NB = int(max(1, min(N, nb_vmem, nb_tiles)))
    num_tiles = pl.cdiv(N, NB)                           # ragged last tile allowed
    vmem_limit = int(vmem_cap * 3 // 4)

    # ------------------- pass 1: BN batch statistics of the raw conv ----------------
    # sum(y) and sum(y^2) of the conv output follow by linearity from the per-channel
    # sums and the Cin x Cin Gram of x, so the weight never enters this pass.  x is
    # shifted by an approximate per-channel mean (image 0) before the Gram to reduce
    # E[x^2] - E[x]^2 cancellation.
    shift = jnp.mean(x3[0].astype(jnp.float32), axis=1)          # (Cin,)
    shift_col = shift.reshape(Cin, 1)

    n_split = 2 if num_tiles >= 2 else 1                 # one accumulator slab per v7x core
    steps_per_split = pl.cdiv(num_tiles, n_split)

    def x_stats_map(c, i):
        t = c * steps_per_split + i
        return (jnp.minimum(t, num_tiles - 1), 0, 0)     # clamp overhang; masked in-kernel

    s1_parts, g_parts = pl.pallas_call(
        _make_stats_kernel(NB, N, steps_per_split),
        grid=(n_split, steps_per_split),
        in_specs=[
            pl.BlockSpec((NB, Cin, HW), x_stats_map),
            pl.BlockSpec((Cin, 1), lambda c, i: (0, 0)),
        ],
        out_specs=(
            pl.BlockSpec((1, Cin, 1), lambda c, i: (c, 0, 0)),
            pl.BlockSpec((1, Cin, Cin), lambda c, i: (c, 0, 0)),
        ),
        out_shape=(
            jax.ShapeDtypeStruct((n_split, Cin, 1), jnp.float32),
            jax.ShapeDtypeStruct((n_split, Cin, Cin), jnp.float32),
        ),
        compiler_params=pltpu.CompilerParams(
            dimension_semantics=("parallel", "arbitrary"),
            vmem_limit_bytes=vmem_limit),
    )(x3, shift_col)

    # -------- fold BatchNorm (batch stats, biased variance) + 1/9 for avg ----------
    nhw = jnp.float32(N * H * W)
    s1 = s1_parts.sum(axis=0).reshape(Cin)                       # sum over core slabs
    gram = g_parts.sum(axis=0)                                   # (Cin, Cin)
    wf = weight.reshape(Cout, Cin).astype(jnp.float32)
    mu_c = s1 / nhw                                              # mean of (x - shift)
    cov = gram / nhw - jnp.outer(mu_c, mu_c)                     # Cov(x) per channel pair
    mean = wf @ (mu_c + shift)                                   # E[conv(x)] per out channel
    var = jnp.maximum(jnp.einsum("oc,cd,od->o", wf, cov, wf), 0.0)   # biased variance
    # TODO(synk): for very large N*H*W a centered second pass (Welford) would be sturdier.
    scale = gamma.astype(jnp.float32) * lax.rsqrt(var + EPS)
    bias = beta.astype(jnp.float32) - mean * scale
    if avg_or_max == "avg":
        # Fold the /9 of count_include_pad AvgPool into the affine: ReLU(a*t) = a*ReLU(t).
        scale = scale * (1.0 / 9.0)
        bias = bias * (1.0 / 9.0)
    w_fold = (wf * scale[:, None]).astype(io_dtype)              # (Cout, Cin)
    bias_col = bias.reshape(Cout, 1)                             # f32, added pre-ReLU

    # ---- static 0/1 lane masks killing wrapped neighbors of the separable pool -----
    p = np.arange(HW)
    mask = np.stack([(p % W != 0),                               # no (w-1) at w == 0
                     (p % W != W - 1),                           # no (w+1) at w == W-1
                     (p // W != 0),                              # no (h-1) at h == 0
                     (p // W != H - 1)],                         # no (h+1) at h == H-1
                    axis=0).astype(np.float32)                   # (4, HW)

    # ------------- pass 2: fused conv(BN folded) + ReLU + 3x3 pool ------------------
    flops = 2 * N * HW * Cin * Cout + 8 * N * HW * Cout
    bytes_accessed = N * HW * (Cin + Cout) * isz + (Cout * Cin + Cout + 4 * HW) * 4
    out3 = pl.pallas_call(
        _make_main_kernel(NB, H, W, avg_or_max),
        grid=(num_tiles,),
        in_specs=[
            pl.BlockSpec((NB, Cin, HW), lambda i: (i, 0, 0)),
            pl.BlockSpec((Cout, Cin), lambda i: (0, 0)),
            pl.BlockSpec((Cout, 1), lambda i: (0, 0)),
            pl.BlockSpec((4, HW), lambda i: (0, 0)),
        ],
        out_specs=pl.BlockSpec((NB, Cout, HW), lambda i: (i, 0, 0)),
        out_shape=jax.ShapeDtypeStruct((N, Cout, HW), io_dtype),
        compiler_params=pltpu.CompilerParams(
            dimension_semantics=("parallel",),
            vmem_limit_bytes=vmem_limit),
        cost_estimate=pl.CostEstimate(
            flops=flops, transcendentals=0, bytes_accessed=bytes_accessed),
    )(x3, w_fold, bias_col, jnp.asarray(mask))

    # Free reshape back to NCHW.
    return out3.reshape(N, Cout, H, W)


def pool_branch_reference(x, weight, gamma, beta, avg_or_max):
    """Pure-JAX reference mirroring the PyTorch module."""
    Cout, Cin = weight.shape[0], weight.shape[1]
    wr = weight.reshape(Cout, Cin)
    y = jnp.einsum("oc,nchw->nohw", wr, x)
    mean = jnp.mean(y, axis=(0, 2, 3), keepdims=True)
    var = jnp.mean(jnp.square(y - mean), axis=(0, 2, 3), keepdims=True)
    y = (y - mean) / jnp.sqrt(var + EPS)
    y = y * gamma.reshape(1, -1, 1, 1) + beta.reshape(1, -1, 1, 1)
    y = jnp.maximum(y, 0.0)
    pad = [(0, 0), (0, 0), (1, 1), (1, 1)]
    if avg_or_max == "avg":
        s = lax.reduce_window(y, 0.0, lax.add, (1, 1, 3, 3), (1, 1, 1, 1), pad)
        return s / 9.0
    else:
        return lax.reduce_window(y, -jnp.inf, lax.max, (1, 1, 3, 3), (1, 1, 1, 1), pad)


if __name__ == "__main__":
    # Small shapes consistent with the module: NCHW input.
    N, Cin, H, W = 2, 4, 16, 16
    Cout = 8

    key = jax.random.PRNGKey(0)
    k_x, k_w, k_g, k_b = jax.random.split(key, 4)

    x = jax.random.normal(k_x, (N, Cin, H, W), dtype=jnp.float32)
    weight = jax.random.normal(k_w, (Cout, Cin, 1, 1), dtype=jnp.float32) * 0.5
    gamma = 1.0 + 0.1 * jax.random.normal(k_g, (Cout,), dtype=jnp.float32)
    beta = 0.1 * jax.random.normal(k_b, (Cout,), dtype=jnp.float32)

    # f32 path: N=2 -> 1 image per tile -> 2 grid steps for the main sweep and a
    # (2-split x 1-step) stats grid, exercising the accumulator + split paths.
    for mode in ("avg", "max"):
        out = jax.block_until_ready(pool_branch(x, weight, gamma, beta, avg_or_max=mode))
        ref = jax.block_until_ready(pool_branch_reference(x, weight, gamma, beta, mode))
        assert out.shape == (N, Cout, H, W), out.shape
        np.testing.assert_allclose(np.asarray(out), np.asarray(ref),
                                   rtol=1e-4, atol=1e-4)

    # bf16 I/O path (bf16 MXU feeds, f32 accumulate / f32 BN & pool arithmetic):
    # compare against the f32 reference evaluated on the bf16-quantized inputs.
    x_bf = x.astype(jnp.bfloat16)
    w_bf = weight.astype(jnp.bfloat16)
    for mode in ("avg", "max"):
        out = jax.block_until_ready(pool_branch(x_bf, w_bf, gamma, beta, avg_or_max=mode))
        ref = jax.block_until_ready(pool_branch_reference(
            x_bf.astype(jnp.float32), w_bf.astype(jnp.float32), gamma, beta, mode))
        np.testing.assert_allclose(np.asarray(out, dtype=np.float32), np.asarray(ref),
                                   rtol=3e-2, atol=3e-2)

    print("KERNEL_OK")
</pallas_src>

<mosaic_0001>
module attributes {stable_mosaic.version = 11 : i64} {
  func.func @kernel(%arg0: i32, %arg1: i32, %arg2: memref<1x4x256xf32, #tpu.memory_space<vmem>>, %arg3: memref<4x1xf32, #tpu.memory_space<vmem>>, %arg4: memref<1x4x1xf32, #tpu.memory_space<vmem>>, %arg5: memref<1x4x4xf32, #tpu.memory_space<vmem>>) attributes {dimension_semantics = [#tpu.dimension_semantics<parallel>, #tpu.dimension_semantics<arbitrary>], iteration_bounds = array<i64: 2, 1>, scalar_prefetch = 0 : i64, scratch_operands = 0 : i64, tpu.core_type = #tpu.core_type<tc>, window_params = [{transform_indices = @transform_0, window_bounds = array<i64: 1, 4, 256>}, {pipeline_mode = #tpu.pipeline_mode<synchronous>, transform_indices = @transform_1, window_bounds = array<i64: 4, 1>}, {transform_indices = @transform_2, window_bounds = array<i64: 1, 4, 1>}, {transform_indices = @transform_3, window_bounds = array<i64: 1, 4, 4>}]} {
    %c0_i32 = arith.constant 0 : i32
    %0 = arith.cmpi eq, %arg1, %c0_i32 : i32
    %1 = arith.extui %0 : i1 to i32
    %c0_i32_0 = arith.constant 0 : i32
    %2 = arith.cmpi ne, %1, %c0_i32_0 : i32
    scf.if %2 {
      %cst_21 = arith.constant 0.000000e+00 : f32
      %27 = vector.broadcast %cst_21 : f32 to vector<1x4x1xf32>
      %c0_22 = arith.constant 0 : index
      %c0_23 = arith.constant 0 : index
      %c0_24 = arith.constant 0 : index
      %28 = vector.load %arg4[%c0_22, %c0_23, %c0_24] : memref<1x4x1xf32, #tpu.memory_space<vmem>>, vector<1x4x1xf32>
      tpu.vector_store %arg4[%c0_22, %c0_23, %c0_24], %27 {strides = array<i32>} : memref<1x4x1xf32, #tpu.memory_space<vmem>>, vector<1x4x1xf32>,
      %cst_25 = arith.constant 0.000000e+00 : f32
      %29 = vector.broadcast %cst_25 : f32 to vector<1x4x4xf32>
      %c0_26 = arith.constant 0 : index
      %c0_27 = arith.constant 0 : index
      %c0_28 = arith.constant 0 : index
      %30 = vector.load %arg5[%c0_26, %c0_27, %c0_28] : memref<1x4x4xf32, #tpu.memory_space<vmem>>, vector<1x4x4xf32>
      tpu.vector_store %arg5[%c0_26, %c0_27, %c0_28], %29 {strides = array<i32>} : memref<1x4x4xf32, #tpu.memory_space<vmem>>, vector<1x4x4xf32>,
    } else {
    }
    %c1_i32 = arith.constant 1 : i32
    %3 = arith.muli %arg0, %c1_i32 : i32
    %4 = arith.addi %3, %arg1 : i32
    %c1_i32_1 = arith.constant 1 : i32
    %5 = arith.muli %4, %c1_i32_1 : i32
    %c0 = arith.constant 0 : index
    %c0_2 = arith.constant 0 : index
    %6 = vector.load %arg3[%c0, %c0_2] : memref<4x1xf32, #tpu.memory_space<vmem>>, vector<4x1xf32>
    %c0_i32_3 = arith.constant 0 : i32
    %7 = arith.addi %5, %c0_i32_3 : i32
    %c2_i32 = arith.constant 2 : i32
    %8 = arith.cmpi slt, %7, %c2_i32 : i32
    %9 = arith.index_cast %c0_i32_3 : i32 to index
    %c0_4 = arith.constant 0 : index
    %c0_5 = arith.constant 0 : index
    %10 = vector.load %arg2[%9, %c0_4, %c0_5] : memref<1x4x256xf32, #tpu.memory_space<vmem>>, vector<1x4x256xf32>
    %11 = vector.shape_cast %10 : vector<1x4x256xf32> to vector<4x256xf32>
    %12 = vector.broadcast %6 : vector<4x1xf32> to vector<4x256xf32>
    %13 = arith.subf %11, %12 : vector<4x256xf32>
    %cst = arith.constant 0.000000e+00 : f32
    %14 = vector.broadcast %cst : f32 to vector<4x256xf32>
    %15 = arith.select %8, %13, %14 : vector<4x256xf32>
    %c0_6 = arith.constant 0 : index
    %c0_7 = arith.constant 0 : index
    %c0_8 = arith.constant 0 : index
    %16 = vector.load %arg4[%c0_6, %c0_7, %c0_8] : memref<1x4x1xf32, #tpu.memory_space<vmem>>, vector<1x4x1xf32>
    %cst_9 = arith.constant dense<0.000000e+00> : vector<4xf32>
    %17 = vector.multi_reduction <add>, %15, %cst_9 [1] : vector<4x256xf32> to vector<4xf32>
    %18 = vector.shape_cast %17 : vector<4xf32> to vector<4x1xf32>
    %19 = vector.shape_cast %18 : vector<4x1xf32> to vector<1x4x1xf32>
    %20 = arith.addf %16, %19 : vector<1x4x1xf32>
    %c0_10 = arith.constant 0 : index
    %c0_11 = arith.constant 0 : index
    %c0_12 = arith.constant 0 : index
    %21 = vector.load %arg4[%c0_10, %c0_11, %c0_12] : memref<1x4x1xf32, #tpu.memory_space<vmem>>, vector<1x4x1xf32>
    tpu.vector_store %arg4[%c0_10, %c0_11, %c0_12], %20 {strides = array<i32>} : memref<1x4x1xf32, #tpu.memory_space<vmem>>, vector<1x4x1xf32>,
    %c0_13 = arith.constant 0 : index
    %c0_14 = arith.constant 0 : index
    %c0_15 = arith.constant 0 : index
    %22 = vector.load %arg5[%c0_13, %c0_14, %c0_15] : memref<1x4x4xf32, #tpu.memory_space<vmem>>, vector<1x4x4xf32>
    %cst_16 = arith.constant dense<0.000000e+00> : vector<4x4xf32>
    %23 = tpu.matmul %15, %15, %cst_16 {dimension_numbers = #tpu.dot_dimension_numbers<[1], [1], [0], [0], [0, 0, 1, 0], [], []>} : vector<4x256xf32>, vector<4x256xf32>, vector<4x4xf32> -> vector<4x4xf32>
    %24 = vector.shape_cast %23 : vector<4x4xf32> to vector<1x4x4xf32>
    %25 = arith.addf %22, %24 : vector<1x4x4xf32>
    %c0_17 = arith.constant 0 : index
    %c0_18 = arith.constant 0 : index
    %c0_19 = arith.constant 0 : index
    %26 = vector.load %arg5[%c0_17, %c0_18, %c0_19] : memref<1x4x4xf32, #tpu.memory_space<vmem>>, vector<1x4x4xf32>
    tpu.vector_store %arg5[%c0_17, %c0_18, %c0_19], %25 {strides = array<i32>} : memref<1x4x4xf32, #tpu.memory_space<vmem>>, vector<1x4x4xf32>,
    %c1_i32_20 = arith.constant 1 : i32
    return
  }
  func.func @transform_0(%arg0: i32, %arg1: i32) -> (i32, i32, i32) {
    %c1_i32 = arith.constant 1 : i32
    %0 = arith.muli %arg0, %c1_i32 : i32
    %1 = arith.addi %0, %arg1 : i32
    %c1_i32_0 = arith.constant 1 : i32
    %2 = arith.minsi %1, %c1_i32_0 : i32
    %c0_i32 = arith.constant 0 : i32
    %c0_i32_1 = arith.constant 0 : i32
    %c0_i32_2 = arith.constant 0 : i32
    return %2, %c0_i32, %c0_i32_1 : i32, i32, i32
  }
  func.func @transform_1(%arg0: i32, %arg1: i32) -> (i32, i32) {
    %c0_i32 = arith.constant 0 : i32
    %c0_i32_0 = arith.constant 0 : i32
    %c0_i32_1 = arith.constant 0 : i32
    return %c0_i32, %c0_i32_0 : i32, i32
  }
  func.func @transform_2(%arg0: i32, %arg1: i32) -> (i32, i32, i32) {
    %c0_i32 = arith.constant 0 : i32
    %c0_i32_0 = arith.constant 0 : i32
    %c0_i32_1 = arith.constant 0 : i32
    return %arg0, %c0_i32, %c0_i32_0 : i32, i32, i32
  }
  func.func @transform_3(%arg0: i32, %arg1: i32) -> (i32, i32, i32) {
    %c0_i32 = arith.constant 0 : i32
    %c0_i32_0 = arith.constant 0 : i32
    %c0_i32_1 = arith.constant 0 : i32
    return %arg0, %c0_i32, %c0_i32_0 : i32, i32, i32
  }
}

module attributes {stable_mosaic.version = 11 : i64} {
  func.func @kernel(%arg0: i32, %arg1: memref<1x4x256xf32, #tpu.memory_space<vmem>>, %arg2: memref<8x4xf32, #tpu.memory_space<vmem>>, %arg3: memref<8x1xf32, #tpu.memory_space<vmem>>, %arg4: memref<4x256xf32, #tpu.memory_space<vmem>>, %arg5: memref<1x8x256xf32, #tpu.memory_space<vmem>>) attributes {dimension_semantics = [#tpu.dimension_semantics<parallel>], iteration_bounds = array<i64: 2>, scalar_prefetch = 0 : i64, scratch_operands = 0 : i64, tpu.core_type = #tpu.core_type<tc>, window_params = [{transform_indices = @transform_0, window_bounds = array<i64: 1, 4, 256>}, {pipeline_mode = #tpu.pipeline_mode<synchronous>, transform_indices = @transform_1, window_bounds = array<i64: 8, 4>}, {pipeline_mode = #tpu.pipeline_mode<synchronous>, transform_indices = @transform_2, window_bounds = array<i64: 8, 1>}, {pipeline_mode = #tpu.pipeline_mode<synchronous>, transform_indices = @transform_3, window_bounds = array<i64: 4, 256>}, {transform_indices = @transform_4, window_bounds = array<i64: 1, 8, 256>}]} {
    %c0 = arith.constant 0 : index
    %c0_0 = arith.constant 0 : index
    %0 = vector.load %arg2[%c0, %c0_0] : memref<8x4xf32, #tpu.memory_space<vmem>>, vector<8x4xf32>
    %c0_1 = arith.constant 0 : index
    %c0_2 = arith.constant 0 : index
    %1 = vector.load %arg3[%c0_1, %c0_2] : memref<8x1xf32, #tpu.memory_space<vmem>>, vector<8x1xf32>
    %c0_3 = arith.constant 0 : index
    %c0_4 = arith.constant 0 : index
    %2 = vector.load %arg4[%c0_3, %c0_4] : memref<4x256xf32, #tpu.memory_space<vmem>>, vector<4x256xf32>
    %3 = vector.extract_strided_slice %2 {offsets = [0, 0], sizes = [1, 256], strides = [1, 1]} : vector<4x256xf32> to vector<1x256xf32>
    %4 = vector.extract_strided_slice %2 {offsets = [1, 0], sizes = [1, 256], strides = [1, 1]} : vector<4x256xf32> to vector<1x256xf32>
    %5 = vector.extract_strided_slice %2 {offsets = [2, 0], sizes = [1, 256], strides = [1, 1]} : vector<4x256xf32> to vector<1x256xf32>
    %6 = vector.extract_strided_slice %2 {offsets = [3, 0], sizes = [1, 256], strides = [1, 1]} : vector<4x256xf32> to vector<1x256xf32>
    %c0_i32 = arith.constant 0 : i32
    %7 = arith.index_cast %c0_i32 : i32 to index
    %c0_5 = arith.constant 0 : index
    %c0_6 = arith.constant 0 : index
    %8 = vector.load %arg1[%7, %c0_5, %c0_6] : memref<1x4x256xf32, #tpu.memory_space<vmem>>, vector<1x4x256xf32>
    %9 = vector.shape_cast %8 : vector<1x4x256xf32> to vector<4x256xf32>
    %cst = arith.constant dense<0.000000e+00> : vector<8x256xf32>
    %10 = tpu.matmul %0, %9, %cst {dimension_numbers = #tpu.dot_dimension_numbers<[1], [0], [0], [1], [0, 0, 1, 1], [], []>} : vector<8x4xf32>, vector<4x256xf32>, vector<8x256xf32> -> vector<8x256xf32>
    %11 = vector.broadcast %1 : vector<8x1xf32> to vector<8x256xf32>
    %12 = arith.addf %10, %11 : vector<8x256xf32>
    %cst_7 = arith.constant 0.000000e+00 : f32
    %13 = vector.broadcast %cst_7 : f32 to vector<8x256xf32>
    %14 = arith.maximumf %12, %13 : vector<8x256xf32>
    %c1_i32 = arith.constant 1 : i32
    %15 = tpu.dynamic_rotate %14 by %c1_i32 dim 1 : vector<8x256xf32>, i32 -> vector<8x256xf32>
    %16 = vector.broadcast %3 : vector<1x256xf32> to vector<8x256xf32>
    %17 = arith.mulf %15, %16 : vector<8x256xf32>
    %c255_i32 = arith.constant 255 : i32
    %18 = tpu.dynamic_rotate %14 by %c255_i32 dim 1 : vector<8x256xf32>, i32 -> vector<8x256xf32>
    %19 = vector.broadcast %4 : vector<1x256xf32> to vector<8x256xf32>
    %20 = arith.mulf %18, %19 : vector<8x256xf32>
    %21 = arith.addf %14, %17 : vector<8x256xf32>
    %22 = arith.addf %21, %20 : vector<8x256xf32>
    %c16_i32 = arith.constant 16 : i32
    %23 = tpu.dynamic_rotate %22 by %c16_i32 dim 1 : vector<8x256xf32>, i32 -> vector<8x256xf32>
    %24 = vector.broadcast %5 : vector<1x256xf32> to vector<8x256xf32>
    %25 = arith.mulf %23, %24 : vector<8x256xf32>
    %c240_i32 = arith.constant 240 : i32
    %26 = tpu.dynamic_rotate %22 by %c240_i32 dim 1 : vector<8x256xf32>, i32 -> vector<8x256xf32>
    %27 = vector.broadcast %6 : vector<1x256xf32> to vector<8x256xf32>
    %28 = arith.mulf %26, %27 : vector<8x256xf32>
    %29 = arith.addf %22, %25 : vector<8x256xf32>
    %30 = arith.addf %29, %28 : vector<8x256xf32>
    %31 = arith.index_cast %c0_i32 : i32 to index
    %c0_8 = arith.constant 0 : index
    %c0_9 = arith.constant 0 : index
    %32 = vector.load %arg5[%31, %c0_8, %c0_9] : memref<1x8x256xf32, #tpu.memory_space<vmem>>, vector<1x8x256xf32>
    %33 = vector.shape_cast %32 : vector<1x8x256xf32> to vector<8x256xf32>
    %34 = vector.shape_cast %30 : vector<8x256xf32> to vector<1x8x256xf32>
    tpu.vector_store %arg5[%31, %c0_8, %c0_9], %34 {strides = array<i32>} : memref<1x8x256xf32, #tpu.memory_space<vmem>>, vector<1x8x256xf32>,
    %c1_i32_10 = arith.constant 1 : i32
    return
  }
  func.func @transform_0(%arg0: i32) -> (i32, i32, i32) {
    %c0_i32 = arith.constant 0 : i32
    %c0_i32_0 = arith.constant 0 : i32
    %c0_i32_1 = arith.constant 0 : i32
    return %arg0, %c0_i32, %c0_i32_0 : i32, i32, i32
  }
  func.func @transform_1(%arg0: i32) -> (i32, i32) {
    %c0_i32 = arith.constant 0 : i32
    %c0_i32_0 = arith.constant 0 : i32
    %c0_i32_1 = arith.constant 0 : i32
    return %c0_i32, %c0_i32_0 : i32, i32
  }
  func.func @transform_2(%arg0: i32) -> (i32, i32) {
    %c0_i32 = arith.constant 0 : i32
    %c0_i32_0 = arith.constant 0 : i32
    %c0_i32_1 = arith.constant 0 : i32
    return %c0_i32, %c0_i32_0 : i32, i32
  }
  func.func @transform_3(%arg0: i32) -> (i32, i32) {
    %c0_i32 = arith.constant 0 : i32
    %c0_i32_0 = arith.constant 0 : i32
    %c0_i32_1 = arith.constant 0 : i32
    return %c0_i32, %c0_i32_0 : i32, i32
  }
  func.func @transform_4(%arg0: i32) -> (i32, i32, i32) {
    %c0_i32 = arith.constant 0 : i32
    %c0_i32_0 = arith.constant 0 : i32
    %c0_i32_1 = arith.constant 0 : i32
    return %arg0, %c0_i32, %c0_i32_0 : i32, i32, i32
  }
}

</mosaic_0001>

<llo_original>
// kernel: pool_branch.3
$region0: #{pool_branch.3}
  #allocation0 [shape = 'u32[]', space=smem, size = 0x4, offset = 0x4, fixed_abs, tag = 'smem constant byte address 0x4 - core index']
  #allocation1 [shape = 'u32[144,128]{1,0:T(1,128)}', space=vmem, size = 0x12000, scoped, tag = 'internal scratch']
  %s0 = inlined_call_operand.vmem [shape: f32[2,4,256], index: 0, kind: input, shape index: {}]
  %s1 = inlined_call_operand.vmem [shape: f32[8,4], index: 1, kind: input, shape index: {}]
  %s2 = inlined_call_operand.vmem [shape: f32[8,1], index: 2, kind: input, shape index: {}]
  %s3 = inlined_call_operand.vmem [shape: f32[4,256], index: 3, kind: input, shape index: {}]
  %s4 = inlined_call_operand.vmem [shape: f32[2,8,256], index: 4, kind: output, shape index: {}]
  %s5 = sld [smem:[#allocation0]]
  $region49: #{pool_branch.3} parent=0
    _
  %s7 = ssub.s32 1, %s5
  %s8 = scalar_select 0, %s7, %s5
  loop: start=0, step=1, limit=4
  $region2: #{pool_branch.3} parent=0 // loop_pre_header
    _
  $region3: #{pool_branch.3} parent=0 // loop_header
    %s10 = sphi 0, %s14
    %p11 = scmp.ge.s32.totalorder %s10, 4
    %s20 = sphi 0, %s22
    %s23 = sphi 0, %s20
    %s24 = sphi 0, %s23
    %s40 = sphi 0, %s24
    %s44 = sphi 0, %s44
    %s46 = sphi 0, %s44
    %s47 = sphi 0, %s46
    %s61 = sphi 0, %s47
    %s65 = sphi 0, %s65
    %s67 = sphi 0, %s65
    %s68 = sphi 0, %s67
    %s82 = sphi 0, %s68
    %s86 = sphi 0, %s86
    %s88 = sphi 0, %s86
    %s89 = sphi 0, %s88
    %s103 = sphi 0, %s89
    %s109 = sphi 0, %s111
    %s112 = sphi 0, %s109
    %s113 = sphi 0, %s112
    %s129 = sphi 0, %s113
  $region4: #{pool_branch.3} parent=0 // loop_header_branch
    %13 = sbr.rel (%p11) target = $region8
  $region5: #{pool_branch.3} parent=0 // loop_body
    %s15 = ssub.s32 %s10, 1
    %s16 = ssub.s32 %s10, 2
    %s17 = sadd.s32 %s10, 1
    %s18 = ssub.s32 %s10, %s17
    %p19 = scmp.eq.s32.totalorder %s18, 0
    %s21 = sadd.s32 %s20, 1
    %s22 = scalar_select %p19, %s20, %s21
    %p25 = pneg %p19
    %p26 = scmp.eq.s32.totalorder %s10, 1
    %p27 = por %p25, %p26
    %p28 = scmp.ne.s32.totalorder %s20, %s23
    %p29 = scmp.eq.s32.totalorder %s10, 0
    %p30 = por %p28, %p29
    %p31 = scmp.ne.s32.totalorder %s20, %s23
    %p32 = scmp.eq.s32.totalorder %s15, 1
    %p33 = por %p31, %p32
    %p34 = scmp.ne.s32.totalorder %s23, %s24
    %p35 = scmp.eq.s32.totalorder %s15, 0
    %p36 = por %p34, %p35
    %p37 = scmp.ne.s32.totalorder %s23, %s24
    %p38 = scmp.eq.s32.totalorder %s16, 1
    %p39 = por %p37, %p38
    %p41 = scmp.ne.s32.totalorder %s24, %s40
    %p42 = scmp.eq.s32.totalorder %s16, 0
    %p43 = por %p41, %p42
    %s45 = sadd.s32 %s44, 1
    %p48 = scmp.eq.s32.totalorder %s10, 1
    %p49 = scmp.ne.s32.totalorder %s44, %s46
    %p50 = scmp.eq.s32.totalorder %s10, 0
    %p51 = por %p49, %p50
    %p52 = scmp.ne.s32.totalorder %s44, %s46
    %p53 = scmp.eq.s32.totalorder %s15, 1
    %p54 = por %p52, %p53
    %p55 = scmp.ne.s32.totalorder %s46, %s47
    %p56 = scmp.eq.s32.totalorder %s15, 0
    %p57 = por %p55, %p56
    %p58 = scmp.ne.s32.totalorder %s46, %s47
    %p59 = scmp.eq.s32.totalorder %s16, 1
    %p60 = por %p58, %p59
    %p62 = scmp.ne.s32.totalorder %s47, %s61
    %p63 = scmp.eq.s32.totalorder %s16, 0
    %p64 = por %p62, %p63
    %s66 = sadd.s32 %s65, 1
    %p69 = scmp.eq.s32.totalorder %s10, 1
    %p70 = scmp.ne.s32.totalorder %s65, %s67
    %p71 = scmp.eq.s32.totalorder %s10, 0
    %p72 = por %p70, %p71
    %p73 = scmp.ne.s32.totalorder %s65, %s67
    %p74 = scmp.eq.s32.totalorder %s15, 1
    %p75 = por %p73, %p74
    %p76 = scmp.ne.s32.totalorder %s67, %s68
    %p77 = scmp.eq.s32.totalorder %s15, 0
    %p78 = por %p76, %p77
    %p79 = scmp.ne.s32.totalorder %s67, %s68
    %p80 = scmp.eq.s32.totalorder %s16, 1
    %p81 = por %p79, %p80
    %p83 = scmp.ne.s32.totalorder %s68, %s82
    %p84 = scmp.eq.s32.totalorder %s16, 0
    %p85 = por %p83, %p84
    %s87 = sadd.s32 %s86, 1
    %p90 = scmp.eq.s32.totalorder %s10, 1
    %p91 = scmp.ne.s32.totalorder %s86, %s88
    %p92 = scmp.eq.s32.totalorder %s10, 0
    %p93 = por %p91, %p92
    %p94 = scmp.ne.s32.totalorder %s86, %s88
    %p95 = scmp.eq.s32.totalorder %s15, 1
    %p96 = por %p94, %p95
    %p97 = scmp.ne.s32.totalorder %s88, %s89
    %p98 = scmp.eq.s32.totalorder %s15, 0
    %p99 = por %p97, %p98
    %p100 = scmp.ne.s32.totalorder %s88, %s89
    %p101 = scmp.eq.s32.totalorder %s16, 1
    %p102 = por %p100, %p101
    %p104 = scmp.ne.s32.totalorder %s89, %s103
    %p105 = scmp.eq.s32.totalorder %s16, 0
    %p106 = por %p104, %p105
    %s107 = ssub.s32 %s10, %s17
    %p108 = scmp.eq.s32.totalorder %s107, 0
    %s110 = sadd.s32 %s109, 1
    %s111 = scalar_select %p108, %s109, %s110
    %p114 = pneg %p108
    %p115 = scmp.eq.s32.totalorder %s10, 1
    %p116 = por %p114, %p115
    %p117 = scmp.ne.s32.totalorder %s109, %s112
    %p118 = scmp.eq.s32.totalorder %s10, 0
    %p119 = por %p117, %p118
    %p120 = scmp.ne.s32.totalorder %s109, %s112
    %p121 = scmp.eq.s32.totalorder %s15, 1
    %p122 = por %p120, %p121
    %p123 = scmp.ne.s32.totalorder %s112, %s113
    %p124 = scmp.eq.s32.totalorder %s15, 0
    %p125 = por %p123, %p124
    %p126 = scmp.ne.s32.totalorder %s112, %s113
    %p127 = scmp.eq.s32.totalorder %s16, 1
    %p128 = por %p126, %p127
    %p130 = scmp.ne.s32.totalorder %s113, %s129
    %p131 = scmp.eq.s32.totalorder %s16, 0
    %p132 = por %p130, %p131
    %p133 = scmp.le.s32.totalorder 1, %s10
    %p134 = scmp.lt.s32.totalorder %s10, 3
    %p135 = pnand %p133, %p134
    %p136 = pneg %p135
    // Predicated region
    $region9: #{pool_branch.3} parent=5 // pred_check
      _
    $region10: #{pool_branch.3} parent=5 // pred_check_branch
      %138 = sbr.rel (%p135) target = $region12
    $region11: #{pool_branch.3} parent=5 // pred_region
      %s139 = ssub.s32 %s10, 1
      // Predicated region
      $region13: #{pool_branch.3} parent=11 // pred_check
        %p140 = pneg %p57
      $region14: #{pool_branch.3} parent=11 // pred_check_branch
        %142 = sbr.rel (%p140) target = $region16
      $region15: #{pool_branch.3} parent=11 // pred_region
        _
      $region16: #{pool_branch.3} parent=11 // pred_fallthru
        _
      // Predicated region
      $region17: #{pool_branch.3} parent=11 // pred_check
        %p143 = pneg %p78
      $region18: #{pool_branch.3} parent=11 // pred_check_branch
        %145 = sbr.rel (%p143) target = $region20
      $region19: #{pool_branch.3} parent=11 // pred_region
        _
      $region20: #{pool_branch.3} parent=11 // pred_fallthru
        _
      // Predicated region
      $region21: #{pool_branch.3} parent=11 // pred_check
        %p146 = pneg %p99
      $region22: #{pool_branch.3} parent=11 // pred_check_branch
        %148 = sbr.rel (%p146) target = $region24
      $region23: #{pool_branch.3} parent=11 // pred_region
        _
      $region24: #{pool_branch.3} parent=11 // pred_fallthru
        _
    $region12: #{pool_branch.3} parent=5 // pred_fallthru
      _
    %p149 = scmp.lt.s32.totalorder %s10, 2
    // Predicated region
    $region25: #{pool_branch.3} parent=5 // pred_check
      %p150 = pneg %p149
    $region26: #{pool_branch.3} parent=5 // pred_check_branch
      %152 = sbr.rel (%p150) target = $region28
    $region27: #{pool_branch.3} parent=5 // pred_region
      // Predicated region
      $region29: #{pool_branch.3} parent=27 // pred_check
        %p153 = pneg %p30
      $region30: #{pool_branch.3} parent=27 // pred_check_branch
        %155 = sbr.rel (%p153) target = $region32
      $region31: #{pool_branch.3} parent=27 // pred_region
        %p156 = scmp.lt.s32.totalorder %s10, 1
        %s157 = scalar_select %p156, %s10, 1
        %s158 = smul.addr %s157, 2
        %s159 = smul.addr %s158, 4
        %s160 = scalar_lea.vmem %s0, %s159
      $region32: #{pool_branch.3} parent=27 // pred_fallthru
        _
    $region28: #{pool_branch.3} parent=5 // pred_fallthru
      _
    %p161 = scmp.le.s32.totalorder 1, %s10
    %p162 = scmp.lt.s32.totalorder %s10, 3
    %p163 = pnand %p161, %p162
    %p164 = pneg %p163
    // Predicated region
    $region33: #{pool_branch.3} parent=5 // pred_check
      _
    $region34: #{pool_branch.3} parent=5 // pred_check_branch
      %166 = sbr.rel (%p163) target = $region36
    $region35: #{pool_branch.3} parent=5 // pred_region
      %s167 = ssub.s32 %s10, 1
      %p168 = scmp.lt.s32.totalorder %s15, 1
      %s169 = scalar_select %p168, %s15, 1
      %s170 = smul.addr %s169, 2
      %s171 = smul.addr %s170, 4
      %s172 = scalar_lea.vmem %s0, %s171
      %p173 = pneg %p36
      %p174 = pneg %p33
      %p175 = pneg %p57
      %p176 = pneg %p54
      %p177 = pneg %p78
      %p178 = pneg %p75
      %p179 = pneg %p99
      %p180 = pneg %p96
      %p181 = pneg %p125
      %p182 = pneg %p122
      %p183 = scmp.lt.s32.totalorder %s15, 1
      %s184 = scalar_select %p183, %s15, 1
      %s185 = smul.addr %s184, 2
      %s186 = smul.addr %s185, 8
      %s187 = scalar_lea.vmem %s4, %s186
      %p188 = scmp.lt.s32.totalorder %s15, 1
      %s189 = scalar_select %p188, %s15, 1
      %s190 = smul.addr %s189, 2
      %s191 = smul.addr %s190, 4
      %s192 = scalar_lea.vmem %s0, %s191
      %p193 = scmp.lt.s32.totalorder %s15, 1
      %s194 = scalar_select %p193, %s15, 1
      %s195 = smul.addr %s194, 2
      %s196 = smul.addr %s195, 8
      %s197 = scalar_lea.vmem %s4, %s196
      %v198 = vld [vmem:[%s1] sm:$0xff]
      %v199 = vld [vmem:[%s2] sm:$0xff]
      %v200 = vld [vmem:[%s3] sm:$0xff]
      %v201 = vld [vmem:[%s192] sm:$0xff]
      %203 = vset.pattern.permute.xlu0 0
      %204 = vperm.xlu0 %203, %v199
      %v205 = vpop.permute.xlu0 %204
      %v208 = vcombine.high %v201, %v201
      %vm209 = vcmask 31744
      %v211 = vsel %vm209, %v198, 0
      %vm213 = vcmask 1043456
      %v214 = vsel %vm213, %v201, 0
      %v216 = vsel %vm213, %v208, 0
      %218 = vmatprep.subr.mxu0 %v216
      %219 = vmatpush1.msra.mxu0 %v214
      %220 = vmatprep.subr.mxu0 0.0
      %221 = vmatpush1.msra.mxu0 0.0
      %222 = vmatprep.subr.mxu0 0.0
      %223 = vmatpush1.msra.mxu0 0.0
      %224 = vmatprep.subr.mxu0 0.0
      %225 = vmatpush1.msra.mxu0 0.0
      %226 = vmatprep.subr.mxu0 0.0
      %227 = vmatpush1.msra.mxu0 0.0
      %228 = vmatprep.subr.mxu0 0.0
      %229 = vmatpush1.msra.mxu0 0.0
      %230 = vmatprep.subr.mxu0 0.0
      %231 = vmatpush1.msra.mxu0 0.0
      %232 = vmatprep.subr.mxu0 0.0
      %233 = vmatpush1.msra.mxu0 0.0
      %234 = vmatprep.subr.mxu0 0.0
      %235 = vmatpush1.msra.mxu0 0.0
      %236 = vmatprep.subr.mxu0 0.0
      %237 = vmatpush1.msra.mxu0 0.0
      %238 = vmatprep.subr.mxu0 0.0
      %239 = vmatpush1.msra.mxu0 0.0
      %240 = vmatprep.subr.mxu0 0.0
      %241 = vmatpush1.msra.mxu0 0.0
      %242 = vmatprep.subr.mxu0 0.0
      %243 = vmatpush1.msra.mxu0 0.0
      %244 = vmatprep.subr.mxu0 0.0
      %245 = vmatpush1.msra.mxu0 0.0
      %246 = vmatprep.subr.mxu0 0.0
      %247 = vmatpush1.msra.mxu0 0.0
      %248 = vmatprep.subr.mxu0 0.0
      %249 = vmatpush1.msra.mxu0 0.0
      %250 = vmatprep.subr.mxu0 0.0
      %251 = vmatpush1.msra.mxu0 0.0
      %252 = vmatprep.subr.mxu0 0.0
      %253 = vmatpush1.msra.mxu0 0.0
      %254 = vmatprep.subr.mxu0 0.0
      %255 = vmatpush1.msra.mxu0 0.0
      %256 = vmatprep.subr.mxu0 0.0
      %257 = vmatpush1.msra.mxu0 0.0
      %258 = vmatprep.subr.mxu0 0.0
      %259 = vmatpush1.msra.mxu0 0.0
      %260 = vmatprep.subr.mxu0 0.0
      %261 = vmatpush1.msra.mxu0 0.0
      %262 = vmatprep.subr.mxu0 0.0
      %263 = vmatpush1.msra.mxu0 0.0
      %264 = vmatprep.subr.mxu0 0.0
      %265 = vmatpush1.msra.mxu0 0.0
      %266 = vmatprep.subr.mxu0 0.0
      %267 = vmatpush1.msra.mxu0 0.0
      %268 = vmatprep.subr.mxu0 0.0
      %269 = vmatpush1.msra.mxu0 0.0
      %270 = vmatprep.subr.mxu0 0.0
      %271 = vmatpush1.msra.mxu0 0.0
      %272 = vmatprep.subr.mxu0 0.0
      %273 = vmatpush1.msra.mxu0 0.0
      %274 = vmatprep.subr.mxu0 0.0
      %275 = vmatpush1.msra.mxu0 0.0
      %276 = vmatprep.subr.mxu0 0.0
      %277 = vmatpush1.msra.mxu0 0.0
      %278 = vmatprep.subr.mxu0 0.0
      %279 = vmatpush1.msra.mxu0 0.0
      %280 = vmatprep.subr.mxu0 0.0
      %281 = vmatpush1.msra.mxu0 0.0
      %282 = vmatprep.mubr.f32.mxu0 0.0
      %283 = vmatmul.mubr.f32.gmra.mrb[0].mxu0 %v211
      %v284 = vpop.f32.mrb[0].mxu0
      %v285 = vadd.f32 %v205, %v284
      %v286 = vpop.f32.mrb[0].mxu0
      %v287 = vadd.f32 %v205, %v286
      %288 = vdwg.mxu0
      %v289 = vmax.f32 %v285, 0.0
      %v290 = vmax.f32 %v287, 0.0
      %291 = vrot.lane.b32.xlu0 %v289, 1
      %v292 = vpop.permute.xlu0 %291
      %293 = vrot.lane.b32.xlu0 %v290, 1
      %v294 = vpop.permute.xlu0 %293
      %v295 = vlaneseq
      %v296 = vand.u32 %v295, 127
      %vm297 = vcmp.lt.s32.totalorder %v296, 1
      %v298 = vsel %vm297, %v292, %v294
      %v299 = vsel %vm297, %v294, %v292
      %v301 = vlaneseq
      %v302 = vshrl.u32 %v301, 7
      %v303 = vsub.s32 0, %v302
      %v304 = vrot.slane %v200, %v303
      %v305 = vlaneseq
      %v306 = vshrl.u32 %v305, 7
      %v307 = vsub.s32 4, %v306
      %v308 = vrot.slane %v200, %v307
      %v311 = vlaneseq
      %v312 = vshrl.u32 %v311, 7
      %v313 = vsub.s32 0, %v312
      %v314 = vrot.slane %v304, %v313
      %v315 = vlaneseq
      %v316 = vshrl.u32 %v315, 7
      %v317 = vsub.s32 0, %v316
      %v318 = vrot.slane %v308, %v317
      %v319 = vmul.f32 %v299, %v314
      %v320 = vmul.f32 %v298, %v318
      %321 = vrot.lane.b32.xlu0 %v289, 127
      %v322 = vpop.permute.xlu0 %321
      %323 = vrot.lane.b32.xlu0 %v290, 127
      %v324 = vpop.permute.xlu0 %323
      %vm325 = vcmp.lt.s32.totalorder %v296, 127
      %v326 = vsel %vm325, %v322, %v324
      %v327 = vsel %vm325, %v324, %v322
      %v328 = vlaneseq
      %v329 = vshrl.u32 %v328, 7
      %v330 = vsub.s32 1, %v329
      %v331 = vrot.slane %v200, %v330
      %v332 = vlaneseq
      %v333 = vshrl.u32 %v332, 7
      %v334 = vsub.s32 5, %v333
      %v335 = vrot.slane %v200, %v334
      %v338 = vlaneseq
      %v339 = vshrl.u32 %v338, 7
      %v340 = vsub.s32 1, %v339
      %v341 = vrot.slane %v331, %v340
      %v342 = vlaneseq
      %v343 = vshrl.u32 %v342, 7
      %v344 = vsub.s32 1, %v343
      %v345 = vrot.slane %v335, %v344
      %v346 = vmul.f32 %v326, %v341
      %v347 = vmul.f32 %v327, %v345
      %v348 = vadd.f32 %v289, %v319
      %v349 = vadd.f32 %v290, %v320
      %v350 = vadd.f32 %v348, %v346
      %v351 = vadd.f32 %v349, %v347
      %352 = vrot.lane.b32.xlu0 %v350, 16
      %v353 = vpop.permute.xlu0 %352
      %354 = vrot.lane.b32.xlu0 %v351, 16
      %v355 = vpop.permute.xlu0 %354
      %vm356 = vcmp.lt.s32.totalorder %v296, 16
      %v357 = vsel %vm356, %v353, %v355
      %v358 = vsel %vm356, %v355, %v353
      %v359 = vlaneseq
      %v360 = vshrl.u32 %v359, 7
      %v361 = vsub.s32 2, %v360
      %v362 = vrot.slane %v200, %v361
      %v363 = vlaneseq
      %v364 = vshrl.u32 %v363, 7
      %v365 = vsub.s32 6, %v364
      %v366 = vrot.slane %v200, %v365
      %v369 = vlaneseq
      %v370 = vshrl.u32 %v369, 7
      %v371 = vsub.s32 2, %v370
      %v372 = vrot.slane %v362, %v371
      %v373 = vlaneseq
      %v374 = vshrl.u32 %v373, 7
      %v375 = vsub.s32 2, %v374
      %v376 = vrot.slane %v366, %v375
      %v377 = vmul.f32 %v358, %v372
      %v378 = vmul.f32 %v357, %v376
      %379 = vrot.lane.b32.xlu0 %v350, 112
      %v380 = vpop.permute.xlu0 %379
      %381 = vrot.lane.b32.xlu0 %v351, 112
      %v382 = vpop.permute.xlu0 %381
      %vm383 = vcmp.lt.s32.totalorder %v296, 112
      %v384 = vsel %vm383, %v380, %v382
      %v385 = vsel %vm383, %v382, %v380
      %v386 = vlaneseq
      %v387 = vshrl.u32 %v386, 7
      %v388 = vsub.s32 3, %v387
      %v389 = vrot.slane %v200, %v388
      %v390 = vlaneseq
      %v391 = vshrl.u32 %v390, 7
      %v392 = vsub.s32 7, %v391
      %v393 = vrot.slane %v200, %v392
      %v396 = vlaneseq
      %v397 = vshrl.u32 %v396, 7
      %v398 = vsub.s32 3, %v397
      %v399 = vrot.slane %v389, %v398
      %v400 = vlaneseq
      %v401 = vshrl.u32 %v400, 7
      %v402 = vsub.s32 3, %v401
      %v403 = vrot.slane %v393, %v402
      %v404 = vmul.f32 %v384, %v399
      %v405 = vmul.f32 %v385, %v403
      %v406 = vadd.f32 %v350, %v377
      %v407 = vadd.f32 %v351, %v378
      %v408 = vadd.f32 %v406, %v404
      %v409 = vadd.f32 %v407, %v405
      %410 = vst [vmem:[%s197] sm:$0xff] %v408
      %411 = vst [vmem:[%s197 + $0x8] sm:$0xff] %v409
      %p412 = scmp.lt.s32.totalorder %s15, 1
      %s413 = scalar_select %p412, %s15, 1
      %s414 = smul.addr %s413, 2
      %s415 = smul.addr %s414, 8
      %s416 = scalar_lea.vmem %s4, %s415
      // Predicated region
      $region37: #{pool_branch.3} parent=35 // pred_check
        %p417 = pneg %p122
      $region38: #{pool_branch.3} parent=35 // pred_check_branch
        %419 = sbr.rel (%p417) target = $region40
      $region39: #{pool_branch.3} parent=35 // pred_region
        _
      $region40: #{pool_branch.3} parent=35 // pred_fallthru
        _
    $region36: #{pool_branch.3} parent=5 // pred_fallthru
      _
    %p420 = scmp.le.s32.totalorder 2, %s10
    // Predicated region
    $region41: #{pool_branch.3} parent=5 // pred_check
      %p421 = pneg %p420
    $region42: #{pool_branch.3} parent=5 // pred_check_branch
      %423 = sbr.rel (%p421) target = $region44
    $region43: #{pool_branch.3} parent=5 // pred_region
      %s424 = ssub.s32 %s10, 2
      // Predicated region
      $region45: #{pool_branch.3} parent=43 // pred_check
        %p425 = pneg %p128
      $region46: #{pool_branch.3} parent=43 // pred_check_branch
        %427 = sbr.rel (%p425) target = $region48
      $region47: #{pool_branch.3} parent=43 // pred_region
        %p428 = scmp.lt.s32.totalorder %s16, 1
        %s429 = scalar_select %p428, %s16, 1
        %s430 = smul.addr %s429, 2
        %s431 = smul.addr %s430, 8
        %s432 = scalar_lea.vmem %s4, %s431
      $region48: #{pool_branch.3} parent=43 // pred_fallthru
        _
    $region44: #{pool_branch.3} parent=5 // pred_fallthru
      _
  $region6: #{pool_branch.3} parent=0 // loop_footer
    %s14 = sadd.s32 1, %s10
  $region7: #{pool_branch.3} parent=0 // loop_footer_branch
    %9 = sbr.rel target = $region3
  $region8: #{pool_branch.3} parent=0 // loop_exit
    _

// kernel: pool_branch.2
$region0: #{pool_branch.2}
  #allocation0 [shape = 'u32[]', space=smem, size = 0x4, offset = 0x4, fixed_abs, tag = 'smem constant byte address 0x4 - core index']
  #allocation1 [shape = 'u32[144,128]{1,0:T(1,128)}', space=vmem, size = 0x12000, scoped, tag = 'internal scratch']
  %s0 = inlined_call_operand.vmem [shape: f32[2,4,256], index: 0, kind: input, shape index: {}]
  %s1 = inlined_call_operand.vmem [shape: f32[4,1], index: 1, kind: input, shape index: {}]
  %s2 = inlined_call_operand.vmem [shape: f32[2,4,1], index: 2, kind: output, shape index: {0}]
  %s3 = inlined_call_operand.vmem [shape: f32[2,4,4], index: 3, kind: output, shape index: {1}]
  %4 = xla_tuple %s2, %s3
  %s5 = sld [smem:[#allocation0]]
  $region53: #{pool_branch.2} parent=0
    _
  %s7 = ssub.s32 1, %s5
  %s8 = scalar_select 0, %s7, %s5
  loop: start=0, step=1, limit=4
  $region2: #{pool_branch.2} parent=0 // loop_pre_header
    _
  $region3: #{pool_branch.2} parent=0 // loop_header
    %s10 = sphi 0, %s14
    %p11 = scmp.ge.s32.totalorder %s10, 4
    %s17 = sphi 0, %s29
    %s18 = sphi 0, %s25
    %s19 = sphi 0, %s17
    %s20 = sphi 0, %s18
    %s21 = sphi 0, %s19
    %s22 = sphi 0, %s20
    %s38 = sphi 0, %s40
    %s41 = sphi 0, %s38
    %s42 = sphi 0, %s41
    %s58 = sphi 0, %s42
    %s62 = sphi 0, %s62
    %s64 = sphi 0, %s62
    %s65 = sphi 0, %s64
    %s79 = sphi 0, %s65
    %s85 = sphi 0, %s87
    %s88 = sphi 0, %s85
    %s89 = sphi 0, %s88
    %s105 = sphi 0, %s89
    %s111 = sphi 0, %s113
    %s114 = sphi 0, %s111
    %s115 = sphi 0, %s114
    %s131 = sphi 0, %s115
  $region4: #{pool_branch.2} parent=0 // loop_header_branch
    %13 = sbr.rel (%p11) target = $region8
  $region5: #{pool_branch.2} parent=0 // loop_body
    %s15 = ssub.s32 %s10, 1
    %s16 = ssub.s32 %s10, 2
    %s23 = sadd.s32 1, %s18
    %p24 = scmp.ge.s32.totalorder %s23, 1
    %s25 = scalar_select %p24, 0, %s23
    %s26 = sadd.s32 1, %s17
    %s27 = scalar_select %p24, %s26, %s17
    %p28 = scmp.ge.s32.totalorder %s27, 2
    %s29 = scalar_select %p28, 0, %s27
    %s30 = sadd.s32 %s17, %s18
    %p31 = scmp.lt.s32.totalorder %s30, 1
    %s32 = scalar_select %p31, %s30, 1
    %s33 = sadd.s32 %s29, %s25
    %p34 = scmp.lt.s32.totalorder %s33, 1
    %s35 = scalar_select %p34, %s33, 1
    %s36 = ssub.s32 %s32, %s35
    %p37 = scmp.eq.s32.totalorder %s36, 0
    %s39 = sadd.s32 %s38, 1
    %s40 = scalar_select %p37, %s38, %s39
    %p43 = pneg %p37
    %p44 = scmp.eq.s32.totalorder %s10, 1
    %p45 = por %p43, %p44
    %p46 = scmp.ne.s32.totalorder %s38, %s41
    %p47 = scmp.eq.s32.totalorder %s10, 0
    %p48 = por %p46, %p47
    %p49 = scmp.ne.s32.totalorder %s38, %s41
    %p50 = scmp.eq.s32.totalorder %s15, 1
    %p51 = por %p49, %p50
    %p52 = scmp.ne.s32.totalorder %s41, %s42
    %p53 = scmp.eq.s32.totalorder %s15, 0
    %p54 = por %p52, %p53
    %p55 = scmp.ne.s32.totalorder %s41, %s42
    %p56 = scmp.eq.s32.totalorder %s16, 1
    %p57 = por %p55, %p56
    %p59 = scmp.ne.s32.totalorder %s42, %s58
    %p60 = scmp.eq.s32.totalorder %s16, 0
    %p61 = por %p59, %p60
    %s63 = sadd.s32 %s62, 1
    %p66 = scmp.eq.s32.totalorder %s10, 1
    %p67 = scmp.ne.s32.totalorder %s62, %s64
    %p68 = scmp.eq.s32.totalorder %s10, 0
    %p69 = por %p67, %p68
    %p70 = scmp.ne.s32.totalorder %s62, %s64
    %p71 = scmp.eq.s32.totalorder %s15, 1
    %p72 = por %p70, %p71
    %p73 = scmp.ne.s32.totalorder %s64, %s65
    %p74 = scmp.eq.s32.totalorder %s15, 0
    %p75 = por %p73, %p74
    %p76 = scmp.ne.s32.totalorder %s64, %s65
    %p77 = scmp.eq.s32.totalorder %s16, 1
    %p78 = por %p76, %p77
    %p80 = scmp.ne.s32.totalorder %s65, %s79
    %p81 = scmp.eq.s32.totalorder %s16, 0
    %p82 = por %p80, %p81
    %s83 = ssub.s32 %s17, %s29
    %p84 = scmp.eq.s32.totalorder %s83, 0
    %s86 = sadd.s32 %s85, 1
    %s87 = scalar_select %p84, %s85, %s86
    %p90 = pneg %p84
    %p91 = scmp.eq.s32.totalorder %s10, 1
    %p92 = por %p90, %p91
    %p93 = scmp.ne.s32.totalorder %s85, %s88
    %p94 = scmp.eq.s32.totalorder %s10, 0
    %p95 = por %p93, %p94
    %p96 = scmp.ne.s32.totalorder %s85, %s88
    %p97 = scmp.eq.s32.totalorder %s15, 1
    %p98 = por %p96, %p97
    %p99 = scmp.ne.s32.totalorder %s88, %s89
    %p100 = scmp.eq.s32.totalorder %s15, 0
    %p101 = por %p99, %p100
    %p102 = scmp.ne.s32.totalorder %s88, %s89
    %p103 = scmp.eq.s32.totalorder %s16, 1
    %p104 = por %p102, %p103
    %p106 = scmp.ne.s32.totalorder %s89, %s105
    %p107 = scmp.eq.s32.totalorder %s16, 0
    %p108 = por %p106, %p107
    %s109 = ssub.s32 %s17, %s29
    %p110 = scmp.eq.s32.totalorder %s109, 0
    %s112 = sadd.s32 %s111, 1
    %s113 = scalar_select %p110, %s111, %s112
    %p116 = pneg %p110
    %p117 = scmp.eq.s32.totalorder %s10, 1
    %p118 = por %p116, %p117
    %p119 = scmp.ne.s32.totalorder %s111, %s114
    %p120 = scmp.eq.s32.totalorder %s10, 0
    %p121 = por %p119, %p120
    %p122 = scmp.ne.s32.totalorder %s111, %s114
    %p123 = scmp.eq.s32.totalorder %s15, 1
    %p124 = por %p122, %p123
    %p125 = scmp.ne.s32.totalorder %s114, %s115
    %p126 = scmp.eq.s32.totalorder %s15, 0
    %p127 = por %p125, %p126
    %p128 = scmp.ne.s32.totalorder %s114, %s115
    %p129 = scmp.eq.s32.totalorder %s16, 1
    %p130 = por %p128, %p129
    %p132 = scmp.ne.s32.totalorder %s115, %s131
    %p133 = scmp.eq.s32.totalorder %s16, 0
    %p134 = por %p132, %p133
    %p135 = scmp.le.s32.totalorder 1, %s10
    %p136 = scmp.lt.s32.totalorder %s10, 3
    %p137 = pnand %p135, %p136
    %p138 = pneg %p137
    // Predicated region
    $region9: #{pool_branch.2} parent=5 // pred_check
      _
    $region10: #{pool_branch.2} parent=5 // pred_check_branch
      %140 = sbr.rel (%p137) target = $region12
    $region11: #{pool_branch.2} parent=5 // pred_region
      %s141 = ssub.s32 %s10, 1
      // Predicated region
      $region13: #{pool_branch.2} parent=11 // pred_check
        %p142 = pneg %p75
      $region14: #{pool_branch.2} parent=11 // pred_check_branch
        %144 = sbr.rel (%p142) target = $region16
      $region15: #{pool_branch.2} parent=11 // pred_region
        _
      $region16: #{pool_branch.2} parent=11 // pred_fallthru
        _
    $region12: #{pool_branch.2} parent=5 // pred_fallthru
      _
    %p145 = scmp.lt.s32.totalorder %s10, 2
    // Predicated region
    $region17: #{pool_branch.2} parent=5 // pred_check
      %p146 = pneg %p145
    $region18: #{pool_branch.2} parent=5 // pred_check_branch
      %148 = sbr.rel (%p146) target = $region20
    $region19: #{pool_branch.2} parent=5 // pred_region
      // Predicated region
      $region21: #{pool_branch.2} parent=19 // pred_check
        %p149 = pneg %p48
      $region22: #{pool_branch.2} parent=19 // pred_check_branch
        %151 = sbr.rel (%p149) target = $region24
      $region23: #{pool_branch.2} parent=19 // pred_region
        %s152 = sadd.s32 %s17, %s18
        %p153 = scmp.lt.s32.totalorder %s152, 1
        %s154 = scalar_select %p153, %s152, 1
        %p155 = scmp.lt.s32.totalorder %s154, 1
        %s156 = scalar_select %p155, %s154, 1
        %s157 = smul.addr %s156, 2
        %s158 = smul.addr %s157, 4
        %s159 = scalar_lea.vmem %s0, %s158
        %s160 = sadd.s32 %s17, %s18
        %p161 = scmp.lt.s32.totalorder %s160, 1
        %s162 = scalar_select %p161, %s160, 1
      $region24: #{pool_branch.2} parent=19 // pred_fallthru
        _
    $region20: #{pool_branch.2} parent=5 // pred_fallthru
      _
    %p163 = scmp.le.s32.totalorder 1, %s10
    %p164 = scmp.lt.s32.totalorder %s10, 3
    %p165 = pnand %p163, %p164
    %p166 = pneg %p165
    // Predicated region
    $region25: #{pool_branch.2} parent=5 // pred_check
      _
    $region26: #{pool_branch.2} parent=5 // pred_check_branch
      %168 = sbr.rel (%p165) target = $region28
    $region27: #{pool_branch.2} parent=5 // pred_region
      %s169 = ssub.s32 %s10, 1
      %s170 = sadd.s32 %s19, %s20
      %p171 = scmp.lt.s32.totalorder %s170, 1
      %s172 = scalar_select %p171, %s170, 1
      %p173 = scmp.lt.s32.totalorder %s172, 1
      %s174 = scalar_select %p173, %s172, 1
      %s175 = smul.addr %s174, 2
      %s176 = smul.addr %s175, 4
      %s177 = scalar_lea.vmem %s0, %s176
      %p178 = pneg %p54
      %p179 = pneg %p51
      %p180 = pneg %p75
      %p181 = pneg %p72
      %p182 = pneg %p101
      %p183 = pneg %p98
      %p184 = scmp.lt.s32.totalorder %s19, 1
      %s185 = scalar_select %p184, %s19, 1
      %s186 = smul.addr %s185, 4
      %s187 = scalar_lea.vmem %s2, %s186
      %p188 = pneg %p127
      %p189 = pneg %p124
      %p190 = scmp.lt.s32.totalorder %s19, 1
      %s191 = scalar_select %p190, %s19, 1
      %s192 = smul.addr %s191, 4
      %s193 = scalar_lea.vmem %s3, %s192
      %s194 = sadd.s32 %s19, %s20
      %p195 = scmp.lt.s32.totalorder %s194, 1
      %s196 = scalar_select %p195, %s194, 1
      %p197 = scmp.lt.s32.totalorder %s196, 1
      %s198 = scalar_select %p197, %s196, 1
      %s199 = smul.addr %s198, 2
      %s200 = smul.addr %s199, 4
      %s201 = scalar_lea.vmem %s0, %s200
      %s202 = sadd.s32 %s19, %s20
      %p203 = scmp.lt.s32.totalorder %s202, 1
      %s204 = scalar_select %p203, %s202, 1
      %p205 = scmp.lt.s32.totalorder %s19, 1
      %s206 = scalar_select %p205, %s19, 1
      %s207 = smul.addr %s206, 4
      %s208 = scalar_lea.vmem %s2, %s207
      %p209 = scmp.lt.s32.totalorder %s19, 1
      %s210 = scalar_select %p209, %s19, 1
      %s211 = smul.addr %s210, 4
      %s212 = scalar_lea.vmem %s3, %s211
      %p213 = scmp.eq.s32.totalorder %s20, 0
      // Predicated region
      $region29: #{pool_branch.2} parent=27 // pred_check
        %p214 = pneg %p213
      $region30: #{pool_branch.2} parent=27 // pred_check_branch
        %216 = sbr.rel (%p214) target = $region32
      $region31: #{pool_branch.2} parent=27 // pred_region
        %vm217 = vcmask 3072
        %218 = vst.msk [vmem:[%s208] sm:$0xf] %vm217, 0.0
        %vm219 = vcmask 27648
        %220 = vst.msk [vmem:[%s212] sm:$0xf] %vm219, 0.0
      $region32: #{pool_branch.2} parent=27 // pred_fallthru
        _
      %s221 = sadd.s32 %s19, %s20
      %v222 = vld [vmem:[%s1] sm:$0xf]
      %p223 = scmp.lt.s32.totalorder %s221, 2
      %v224 = vld [vmem:[%s201] sm:$0xff]
      %226 = vset.pattern.permute.xlu0 0
      %227 = vperm.xlu0 %226, %v222
      %v228 = vpop.permute.xlu0 %227
      %v230 = vunpack.c.l.s4 839922192
      %v231 = vunpack.c.0.s8 %v230
      %v232 = vlaneseq
      %v233 = vshrl.u32 %v232, 7
      %v234 = vsub.s32 %v231, %v233
      %v235 = vrot.slane %v228, %v234
      %v237 = vsub.f32 %v224, %v235
      %s238 = scalar_select %p223, 1, 0
      %v239 = vstv %s238
      %vm240 = vcmp.eq.s32.totalorder %v239, 1
      %v241 = vsel %vm240, %v237, 0.0
      %v242 = vld [vmem:[%s208] sm:$0xf]
      %v244 = vcombine.high %v241, %v241
      %vm246 = vcmask 1043456
      %v247 = vsel %vm246, %v241, 0.0
      %v248 = vsel %vm246, %v244, 0.0
      %v249 = vadd.f32 %v247, %v248
      %250 = vadd.xlane.f32.xlu0 %v249
      %v251 = vpop.xlane.xlu0 %250
      %v252 = vadd.f32 %v242, %v251
      %vm253 = vcmask 3072
      %254 = vst.msk [vmem:[%s208] sm:$0xf] %vm253, %v252
      %v255 = vld [vmem:[%s212] sm:$0xf]
      %256 = vmatprep.subr.mxu0 %v244
      %257 = vmatpush1.xpose.msra.mxu0 %v241
      %258 = vmatprep.subr.mxu0 0.0
      %259 = vmatpush1.xpose.msra.mxu0 0.0
      %260 = vmatprep.subr.mxu0 0.0
      %261 = vmatpush1.xpose.msra.mxu0 0.0
      %262 = vmatprep.subr.mxu0 0.0
      %263 = vmatpush1.xpose.msra.mxu0 0.0
      %264 = vmatprep.subr.mxu0 0.0
      %265 = vmatpush1.xpose.msra.mxu0 0.0
      %266 = vmatprep.subr.mxu0 0.0
      %267 = vmatpush1.xpose.msra.mxu0 0.0
      %268 = vmatprep.subr.mxu0 0.0
      %269 = vmatpush1.xpose.msra.mxu0 0.0
      %270 = vmatprep.subr.mxu0 0.0
      %271 = vmatpush1.xpose.msra.mxu0 0.0
      %272 = vmatprep.subr.mxu0 0.0
      %273 = vmatpush1.xpose.msra.mxu0 0.0
      %274 = vmatprep.subr.mxu0 0.0
      %275 = vmatpush1.xpose.msra.mxu0 0.0
      %276 = vmatprep.subr.mxu0 0.0
      %277 = vmatpush1.xpose.msra.mxu0 0.0
      %278 = vmatprep.subr.mxu0 0.0
      %279 = vmatpush1.xpose.msra.mxu0 0.0
      %280 = vmatprep.subr.mxu0 0.0
      %281 = vmatpush1.xpose.msra.mxu0 0.0
      %282 = vmatprep.subr.mxu0 0.0
      %283 = vmatpush1.xpose.msra.mxu0 0.0
      %284 = vmatprep.subr.mxu0 0.0
      %285 = vmatpush1.xpose.msra.mxu0 0.0
      %286 = vmatprep.subr.mxu0 0.0
      %287 = vmatpush1.xpose.msra.mxu0 0.0
      %288 = vmatprep.subr.mxu0 0.0
      %289 = vmatpush1.xpose.msra.mxu0 0.0
      %290 = vmatprep.subr.mxu0 0.0
      %291 = vmatpush1.xpose.msra.mxu0 0.0
      %292 = vmatprep.subr.mxu0 0.0
      %293 = vmatpush1.xpose.msra.mxu0 0.0
      %294 = vmatprep.subr.mxu0 0.0
      %295 = vmatpush1.xpose.msra.mxu0 0.0
      %296 = vmatprep.subr.mxu0 0.0
      %297 = vmatpush1.xpose.msra.mxu0 0.0
      %298 = vmatprep.subr.mxu0 0.0
      %299 = vmatpush1.xpose.msra.mxu0 0.0
      %300 = vmatprep.subr.mxu0 0.0
      %301 = vmatpush1.xpose.msra.mxu0 0.0
      %302 = vmatprep.subr.mxu0 0.0
      %303 = vmatpush1.xpose.msra.mxu0 0.0
      %304 = vmatprep.subr.mxu0 0.0
      %305 = vmatpush1.xpose.msra.mxu0 0.0
      %306 = vmatprep.subr.mxu0 0.0
      %307 = vmatpush1.xpose.msra.mxu0 0.0
      %308 = vmatprep.subr.mxu0 0.0
      %309 = vmatpush1.xpose.msra.mxu0 0.0
      %310 = vmatprep.subr.mxu0 0.0
      %311 = vmatpush1.xpose.msra.mxu0 0.0
      %312 = vmatprep.subr.mxu0 0.0
      %313 = vmatpush1.xpose.msra.mxu0 0.0
      %314 = vmatprep.subr.mxu0 0.0
      %315 = vmatpush1.xpose.msra.mxu0 0.0
      %316 = vmatprep.subr.mxu0 0.0
      %317 = vmatpush1.xpose.msra.mxu0 0.0
      %318 = vmatprep.subr.mxu0 0.0
      %319 = vmatpush1.xpose.msra.mxu0 0.0
      %320 = vmatprep.mubr.f32.mxu0 %v244
      %321 = vmatmul.mubr.f32.gmra.mrb[0].mxu0 %v241
      %v322 = vpop.f32.mrb[0].mxu0
      %v323 = vadd.f32 0.0, %v322
      %v324 = vpop.f32.mrb[0].mxu0
      %325 = vdwg.mxu0
      %v326 = vadd.f32 %v255, %v323
      %vm327 = vcmask 27648
      %328 = vst.msk [vmem:[%s212] sm:$0xf] %vm327, %v326
      %p329 = scmp.lt.s32.totalorder %s19, 1
      %s330 = scalar_select %p329, %s19, 1
      %s331 = smul.addr %s330, 4
      %s332 = scalar_lea.vmem %s2, %s331
      %p333 = scmp.lt.s32.totalorder %s19, 1
      %s334 = scalar_select %p333, %s19, 1
      %s335 = smul.addr %s334, 4
      %s336 = scalar_lea.vmem %s3, %s335
      // Predicated region
      $region33: #{pool_branch.2} parent=27 // pred_check
        %p337 = pneg %p98
      $region34: #{pool_branch.2} parent=27 // pred_check_branch
        %339 = sbr.rel (%p337) target = $region36
      $region35: #{pool_branch.2} parent=27 // pred_region
        _
      $region36: #{pool_branch.2} parent=27 // pred_fallthru
        _
      // Predicated region
      $region37: #{pool_branch.2} parent=27 // pred_check
        %p340 = pneg %p124
      $region38: #{pool_branch.2} parent=27 // pred_check_branch
        %342 = sbr.rel (%p340) target = $region40
      $region39: #{pool_branch.2} parent=27 // pred_region
        _
      $region40: #{pool_branch.2} parent=27 // pred_fallthru
        _
    $region28: #{pool_branch.2} parent=5 // pred_fallthru
      _
    %p343 = scmp.le.s32.totalorder 2, %s10
    // Predicated region
    $region41: #{pool_branch.2} parent=5 // pred_check
      %p344 = pneg %p343
    $region42: #{pool_branch.2} parent=5 // pred_check_branch
      %346 = sbr.rel (%p344) target = $region44
    $region43: #{pool_branch.2} parent=5 // pred_region
      %s347 = ssub.s32 %s10, 2
      // Predicated region
      $region45: #{pool_branch.2} parent=43 // pred_check
        %p348 = pneg %p104
      $region46: #{pool_branch.2} parent=43 // pred_check_branch
        %350 = sbr.rel (%p348) target = $region48
      $region47: #{pool_branch.2} parent=43 // pred_region
        %p351 = scmp.lt.s32.totalorder %s21, 1
        %s352 = scalar_select %p351, %s21, 1
        %s353 = smul.addr %s352, 4
        %s354 = scalar_lea.vmem %s2, %s353
      $region48: #{pool_branch.2} parent=43 // pred_fallthru
        _
      // Predicated region
      $region49: #{pool_branch.2} parent=43 // pred_check
        %p355 = pneg %p130
      $region50: #{pool_branch.2} parent=43 // pred_check_branch
        %357 = sbr.rel (%p355) target = $region52
      $region51: #{pool_branch.2} parent=43 // pred_region
        %p358 = scmp.lt.s32.totalorder %s21, 1
        %s359 = scalar_select %p358, %s21, 1
        %s360 = smul.addr %s359, 4
        %s361 = scalar_lea.vmem %s3, %s360
      $region52: #{pool_branch.2} parent=43 // pred_fallthru
        _
    $region44: #{pool_branch.2} parent=5 // pred_fallthru
      _
  $region6: #{pool_branch.2} parent=0 // loop_footer
    %s14 = sadd.s32 1, %s10
  $region7: #{pool_branch.2} parent=0 // loop_footer_branch
    %9 = sbr.rel target = $region3
  $region8: #{pool_branch.2} parent=0 // loop_exit
    _

</llo_original>
